<compile_context>
chip_gen: v6e
topology: v6e:2x2x1
jax: 0.10.0
libtpu: 0.0.40
codegen_flags: <defaults>
</compile_context>

<pallas_src>
import math

import jax
import jax.numpy as jnp
from jax import lax
from jax.experimental import pallas as pl
from jax.experimental.pallas import tpu as pltpu

_LANES = 128
_CHUNK = 8 * _LANES            # 1024 elements = one (8, 128) f32 vreg
_LOG2 = math.log(2.0)
_VMEM_BLOCK_BUDGET = 32 << 20  # 2 inputs x 2 pipeline buffers must fit in this
_VMEM_LIMIT_CAP = 48 << 20     # stays well inside v7x's 64 MiB physical VMEM


def _log_cosh_f32(x):
    """log(cosh(x)) = x + softplus(-2x) - log(2), with a stable softplus."""
    # TODO(synk): if bf16 inputs on v7x turn out EUP-bound, evaluate computing
    # the exp/log1p in bf16 while keeping the subtraction/accumulation in f32.
    z = -2.0 * x
    return x + (jnp.maximum(z, 0.0) + jnp.log1p(jnp.exp(-jnp.abs(z)))) - _LOG2


def _default_num_cores() -> int:
    # Only multi-TensorCore chips (v7x, v4/v5p megacore) benefit from the outer
    # "parallel" grid axis; on single-TC v5e/v6e it would just be a serial loop
    # that can trigger extra masking and clamped duplicate tail DMAs.
    try:
        kind = jax.devices()[0].device_kind.lower()
    except Exception:  # pragma: no cover - non-TPU / interpret fallback
        return 1
    return 2 if ("v7" in kind or "v4" in kind) else 1


def log_cosh_loss_pallas(y_pred: jax.Array, y_true: jax.Array,
                         *, tile_rows: int = 4096,
                         num_cores: int | None = None) -> jax.Array:
    assert y_pred.shape == y_true.shape, (y_pred.shape, y_true.shape)
    n = y_pred.size
    if n == 0:
        return jnp.float32(0.0)
    if num_cores is None:
        num_cores = _default_num_cores()

    # Keep native dtype (bf16 inputs read half the HBM bytes); cast in-kernel.
    pred_flat = jnp.ravel(y_pred)
    true_flat = jnp.ravel(y_true)

    # Pallas handles the 1024-aligned prefix; the (<1024-element) tail is
    # reduced with plain jnp so we never materialize padded copies of the
    # full inputs.  log_cosh contributions are summed, then divided by n once.
    n_main = (n // _CHUNK) * _CHUNK
    tail_sum = jnp.float32(0.0)
    if n_main != n:
        xt = (pred_flat[n_main:].astype(jnp.float32)
              - true_flat[n_main:].astype(jnp.float32))
        tail_sum = jnp.sum(_log_cosh_f32(xt), dtype=jnp.float32)
    if n_main == 0:
        return (tail_sum / jnp.float32(n)).astype(jnp.float32)

    pred_main = pred_flat if n_main == n else pred_flat[:n_main]
    true_main = true_flat if n_main == n else true_flat[:n_main]

    rows = n_main // _LANES                 # guaranteed multiple of 8
    pred2d = pred_main.reshape(rows, _LANES)
    true2d = true_main.reshape(rows, _LANES)

    itemsize = jnp.dtype(y_pred.dtype).itemsize
    # Cap tile so 2 inputs x 2 pipeline buffers fit the VMEM budget (v7x-safe).
    max_tile_rows = max(8, (_VMEM_BLOCK_BUDGET // (4 * _LANES * itemsize)) // 8 * 8)
    tile_rows = min(tile_rows, rows, max_tile_rows)
    tile_rows = max(8, (tile_rows // 8) * 8)

    n_tiles = pl.cdiv(rows, tile_rows)
    n_outer = max(1, min(num_cores, n_tiles))     # >1 only on multi-TC chips
    n_inner = pl.cdiv(n_tiles, n_outer)
    need_mask = (n_outer * n_inner * tile_rows) != rows

    # Inner accumulation chunk: small enough that per-chunk intermediates stay
    # largely in vregs instead of spilling to VMEM at multi-MiB tile sizes.
    ch_rows = 128
    while tile_rows % ch_rows != 0:
        ch_rows //= 2                              # terminates at 8
    n_chunks = tile_rows // ch_rows
    unroll = 4
    while n_chunks % unroll != 0:
        unroll //= 2                               # terminates at 1

    def kernel(pred_ref, true_ref, out_ref):
        o = pl.program_id(0)
        j = pl.program_id(1)

        @pl.when(j == 0)
        def _init():
            out_ref[...] = jnp.zeros_like(out_ref)

        tile_row0 = (o * n_inner + j) * tile_rows

        def body(c, acc):
            r0 = pl.multiple_of(c * ch_rows, ch_rows)
            x = (pred_ref[pl.ds(r0, ch_rows), :].astype(jnp.float32)
                 - true_ref[pl.ds(r0, ch_rows), :].astype(jnp.float32))
            lc = _log_cosh_f32(x)
            if need_mask:
                # Zero rows beyond the logical extent (partial / clamped tiles).
                gid = (tile_row0 + r0
                       + lax.broadcasted_iota(jnp.int32, lc.shape, 0))
                lc = jnp.where(gid < rows, lc, 0.0)
            # Fold into one vreg-shaped partial sum (pure VPU adds); the
            # expensive cross-lane reduction happens once in the wrapper.
            return acc + jnp.sum(lc.reshape(ch_rows // 8, 8, _LANES), axis=0)

        part = lax.fori_loop(0, n_chunks, body,
                             jnp.zeros((8, _LANES), jnp.float32),
                             unroll=unroll)
        out_ref[...] += part[None, :, :]

    block_bytes = tile_rows * _LANES * itemsize
    vmem_limit = int(min(_VMEM_LIMIT_CAP,
                         max(32 << 20, 4 * block_bytes + (2 << 20))))

    partials = pl.pallas_call(
        kernel,
        out_shape=jax.ShapeDtypeStruct((n_outer, 8, _LANES), jnp.float32),
        grid_spec=pltpu.PrefetchScalarGridSpec(
            num_scalar_prefetch=0,
            grid=(n_outer, n_inner),
            in_specs=[
                pl.BlockSpec((tile_rows, _LANES), lambda o, j: (o * n_inner + j, 0)),
                pl.BlockSpec((tile_rows, _LANES), lambda o, j: (o * n_inner + j, 0)),
            ],
            out_specs=pl.BlockSpec((1, 8, _LANES), lambda o, j: (o, 0, 0)),
        ),
        compiler_params=pltpu.CompilerParams(
            dimension_semantics=("parallel", "arbitrary"),
            vmem_limit_bytes=vmem_limit),
    )(pred2d, true2d)

    total = jnp.sum(partials, dtype=jnp.float32) + tail_sum
    return (total / jnp.float32(n)).astype(jnp.float32)


class LogCoshLoss:
    """Pallas-backed equivalent of the PyTorch LogCoshLoss module."""

    def __call__(self, y_pred: jax.Array, y_true: jax.Array) -> jax.Array:
        return log_cosh_loss_pallas(y_pred, y_true)


def _reference(y_pred, y_true):
    x = y_pred.astype(jnp.float32) - y_true.astype(jnp.float32)
    return jnp.mean(x + jax.nn.softplus(-2.0 * x) - _LOG2)


if __name__ == "__main__":
    key = jax.random.PRNGKey(0)
    loss_mod = LogCoshLoss()

    # NCHW-shaped example, consistent with a typical image-regression use.
    k1, k2 = jax.random.split(key)
    shape = (2, 4, 16, 16)
    y_pred = jax.random.normal(k1, shape, dtype=jnp.float32)
    y_true = jax.random.normal(k2, shape, dtype=jnp.float32)
    out = jax.block_until_ready(loss_mod(y_pred, y_true))
    ref = _reference(y_pred, y_true)
    assert jnp.allclose(out, ref, rtol=1e-5, atol=1e-6), (out, ref)

    # Unaligned element count: exercises the Pallas prefix + jnp tail path.
    k3, k4 = jax.random.split(k2)
    shape2 = (2, 4, 16, 17)  # 2176 elements (not a multiple of 1024)
    y_pred2 = jax.random.normal(k3, shape2, dtype=jnp.float32)
    y_true2 = jax.random.normal(k4, shape2, dtype=jnp.float32)
    out2 = jax.block_until_ready(loss_mod(y_pred2, y_true2))
    ref2 = _reference(y_pred2, y_true2)
    assert jnp.allclose(out2, ref2, rtol=1e-5, atol=1e-6), (out2, ref2)

    print("KERNEL_OK")
</pallas_src>

<mosaic_0001>
module attributes {stable_mosaic.version = 11 : i64} {
  func.func @kernel(%arg0: i32, %arg1: i32, %arg2: memref<16x128xf32, #tpu.memory_space<vmem>>, %arg3: memref<16x128xf32, #tpu.memory_space<vmem>>, %arg4: memref<1x8x128xf32, #tpu.memory_space<vmem>>) attributes {dimension_semantics = [#tpu.dimension_semantics<parallel>, #tpu.dimension_semantics<arbitrary>], iteration_bounds = array<i64: 1, 1>, scalar_prefetch = 0 : i64, scratch_operands = 0 : i64, tpu.core_type = #tpu.core_type<tc>, window_params = [{transform_indices = @transform_0, window_bounds = array<i64: 16, 128>}, {transform_indices = @transform_1, window_bounds = array<i64: 16, 128>}, {transform_indices = @transform_2, window_bounds = array<i64: 1, 8, 128>}]} {
    %c0_i32 = arith.constant 0 : i32
    %0 = arith.cmpi eq, %arg1, %c0_i32 : i32
    %1 = arith.extui %0 : i1 to i32
    %c0_i32_0 = arith.constant 0 : i32
    %2 = arith.cmpi ne, %1, %c0_i32_0 : i32
    scf.if %2 {
      %cst_14 = arith.constant 0.000000e+00 : f32
      %31 = vector.broadcast %cst_14 : f32 to vector<1x8x128xf32>
      %c0_15 = arith.constant 0 : index
      %c0_16 = arith.constant 0 : index
      %c0_17 = arith.constant 0 : index
      %32 = vector.load %arg4[%c0_15, %c0_16, %c0_17] : memref<1x8x128xf32, #tpu.memory_space<vmem>>, vector<1x8x128xf32>
      tpu.vector_store %arg4[%c0_15, %c0_16, %c0_17], %31 {strides = array<i32>} : memref<1x8x128xf32, #tpu.memory_space<vmem>>, vector<1x8x128xf32>,
    } else {
    }
    %cst = arith.constant 0.000000e+00 : f32
    %3 = vector.broadcast %cst : f32 to vector<8x128xf32>
    %c0_i32_1 = arith.constant 0 : i32
    %c16_i32 = arith.constant 16 : i32
    %4 = arith.muli %c0_i32_1, %c16_i32 : i32
    %5 = tpu.assume_multiple %4, 16 : i32
    %6 = arith.index_cast %5 : i32 to index
    %c0 = arith.constant 0 : index
    %7 = vector.load %arg2[%6, %c0] : memref<16x128xf32, #tpu.memory_space<vmem>>, vector<16x128xf32>
    %8 = arith.index_cast %5 : i32 to index
    %c0_2 = arith.constant 0 : index
    %9 = vector.load %arg3[%8, %c0_2] : memref<16x128xf32, #tpu.memory_space<vmem>>, vector<16x128xf32>
    %10 = arith.subf %7, %9 : vector<16x128xf32>
    %cst_3 = arith.constant -2.000000e+00 : f32
    %11 = vector.broadcast %cst_3 : f32 to vector<16x128xf32>
    %12 = arith.mulf %11, %10 : vector<16x128xf32>
    %cst_4 = arith.constant 0.000000e+00 : f32
    %13 = vector.broadcast %cst_4 : f32 to vector<16x128xf32>
    %14 = arith.maximumf %12, %13 : vector<16x128xf32>
    %15 = math.absf %12 : vector<16x128xf32>
    %cst_5 = arith.constant 0.000000e+00 : f32
    %16 = vector.broadcast %cst_5 : f32 to vector<16x128xf32>
    %17 = arith.subf %16, %15 : vector<16x128xf32>
    %18 = math.exp %17 : vector<16x128xf32>
    %19 = math.log1p %18 : vector<16x128xf32>
    %20 = arith.addf %14, %19 : vector<16x128xf32>
    %21 = arith.addf %10, %20 : vector<16x128xf32>
    %cst_6 = arith.constant 0.693147182 : f32
    %22 = vector.broadcast %cst_6 : f32 to vector<16x128xf32>
    %23 = arith.subf %21, %22 : vector<16x128xf32>
    %24 = vector.shape_cast %23 : vector<16x128xf32> to vector<2x8x128xf32>
    %cst_7 = arith.constant dense<0.000000e+00> : vector<8x128xf32>
    %25 = vector.multi_reduction <add>, %24, %cst_7 [0] : vector<2x8x128xf32> to vector<8x128xf32>
    %26 = arith.addf %3, %25 : vector<8x128xf32>
    %c1_i32 = arith.constant 1 : i32
    %c0_8 = arith.constant 0 : index
    %c0_9 = arith.constant 0 : index
    %c0_10 = arith.constant 0 : index
    %27 = vector.load %arg4[%c0_8, %c0_9, %c0_10] : memref<1x8x128xf32, #tpu.memory_space<vmem>>, vector<1x8x128xf32>
    %28 = vector.shape_cast %26 : vector<8x128xf32> to vector<1x8x128xf32>
    %29 = arith.addf %27, %28 : vector<1x8x128xf32>
    %c0_11 = arith.constant 0 : index
    %c0_12 = arith.constant 0 : index
    %c0_13 = arith.constant 0 : index
    %30 = vector.load %arg4[%c0_11, %c0_12, %c0_13] : memref<1x8x128xf32, #tpu.memory_space<vmem>>, vector<1x8x128xf32>
    tpu.vector_store %arg4[%c0_11, %c0_12, %c0_13], %29 {strides = array<i32>} : memref<1x8x128xf32, #tpu.memory_space<vmem>>, vector<1x8x128xf32>,
    return
  }
  func.func @transform_0(%arg0: i32, %arg1: i32) -> (i32, i32) {
    %c1_i32 = arith.constant 1 : i32
    %0 = arith.muli %arg0, %c1_i32 : i32
    %1 = arith.addi %0, %arg1 : i32
    %c0_i32 = arith.constant 0 : i32
    %c0_i32_0 = arith.constant 0 : i32
    return %1, %c0_i32 : i32, i32
  }
  func.func @transform_1(%arg0: i32, %arg1: i32) -> (i32, i32) {
    %c1_i32 = arith.constant 1 : i32
    %0 = arith.muli %arg0, %c1_i32 : i32
    %1 = arith.addi %0, %arg1 : i32
    %c0_i32 = arith.constant 0 : i32
    %c0_i32_0 = arith.constant 0 : i32
    return %1, %c0_i32 : i32, i32
  }
  func.func @transform_2(%arg0: i32, %arg1: i32) -> (i32, i32, i32) {
    %c0_i32 = arith.constant 0 : i32
    %c0_i32_0 = arith.constant 0 : i32
    %c0_i32_1 = arith.constant 0 : i32
    return %arg0, %c0_i32, %c0_i32_0 : i32, i32, i32
  }
}

</mosaic_0001>

<llo_original>
// kernel: tpu_custom_call.1
$region0: #{tpu_custom_call.1}
  #allocation0 [shape = 'u32[]', space=smem, size = 0x4, offset = 0x4, fixed_abs, tag = 'smem constant byte address 0x4 - core index']
  #allocation1 [shape = 'u32[144,128]{1,0:T(1,128)}', space=vmem, size = 0x12000, scoped, tag = 'internal scratch']
  %s0 = inlined_call_operand.hbm [shape: f32[16,128], index: 0, kind: input, shape index: {}]
  %s1 = inlined_call_operand.hbm [shape: f32[16,128], index: 1, kind: input, shape index: {}]
  %s2 = inlined_call_operand.hbm [shape: f32[1,8,128], index: 2, kind: output, shape index: {}]
  %s3 = sld [smem:[#allocation0]]
  $region30: #{tpu_custom_call.1} parent=0
    _
  %s5 = ssub.s32 1, %s3
  %s6 = scalar_select 0, %s5, %s3
  $region1: #{tpu_custom_call.1} parent=0
    #allocation2 [shape = 'u8[8192]{0}', space=vmem, size = 0x2000, scoped, tag = 'input window, operand 0, single buffered']
    #allocation3 [shape = 's32[1]{0}', space=sflag, size = 0x4, scoped, tag = 'scoped memory for tpu_custom_call.1']
    #allocation4 [shape = 's32[1]{0}', space=sflag, size = 0x4, scoped, tag = 'scoped memory for tpu_custom_call.1']
    #allocation5 [shape = 'u8[8192]{0}', space=vmem, size = 0x2000, scoped, tag = 'input window, operand 1, single buffered']
    #allocation6 [shape = 's32[1]{0}', space=sflag, size = 0x4, scoped, tag = 'scoped memory for tpu_custom_call.1']
    #allocation7 [shape = 'u8[4096]{0}', space=vmem, size = 0x1000, scoped, tag = 'output window, operand 0, single buffered']
    %7 = vsyncpa [#allocation3], 0
    %8 = vsyncpa [#allocation6], 0
    %9 = vsyncpa [#allocation4], 0
    // Predicated region
    $region2: #{tpu_custom_call.1} parent=1 // pred_check
      _
    $region3: #{tpu_custom_call.1} parent=1 // pred_check_branch
      %11 = sbr.rel (0) target = $region5
    $region4: #{tpu_custom_call.1} parent=1 // pred_region
      %s12 = sadd.s32 0, 0
      %s13 = smul.u32 2, %s12
      %s15 = ssub.s32 256, 256
      %16 = vsyncadd [#allocation3], %s15
      %s17 = smul.addr %s13, 128
      %s18 = scalar_lea.hbm %s0, %s17
      %s19 = sshll.u32 [#allocation2], 4
      %s20 = int_to_ptr.vmem [resolvable:$true] %s19
      %25 = dma.hbm_to_vmem [thread:$0]  %s18, 256, %s20, [#allocation3], 128, 128, 8
    $region5: #{tpu_custom_call.1} parent=1 // pred_fallthru
      _
    // Predicated region
    $region6: #{tpu_custom_call.1} parent=1 // pred_check
      _
    $region7: #{tpu_custom_call.1} parent=1 // pred_check_branch
      %27 = sbr.rel (0) target = $region9
    $region8: #{tpu_custom_call.1} parent=1 // pred_region
      %s28 = sadd.s32 0, 0
      %s29 = smul.u32 2, %s28
      %s31 = ssub.s32 256, 256
      %32 = vsyncadd [#allocation6], %s31
      %s33 = smul.addr %s29, 128
      %s34 = scalar_lea.hbm %s1, %s33
      %s35 = sshll.u32 [#allocation5], 4
      %s36 = int_to_ptr.vmem [resolvable:$true] %s35
      %41 = dma.hbm_to_vmem [thread:$0]  %s34, 256, %s36, [#allocation6], 128, 128, 8
    $region9: #{tpu_custom_call.1} parent=1 // pred_fallthru
      _
    // Predicated region
    $region10: #{tpu_custom_call.1} parent=1 // pred_check
      _
    $region11: #{tpu_custom_call.1} parent=1 // pred_check_branch
      %43 = sbr.rel (0) target = $region13
    $region12: #{tpu_custom_call.1} parent=1 // pred_region
      %44 = dma.done [#allocation3], 256
    $region13: #{tpu_custom_call.1} parent=1 // pred_fallthru
      _
    // Predicated region
    $region14: #{tpu_custom_call.1} parent=1 // pred_check
      _
    $region15: #{tpu_custom_call.1} parent=1 // pred_check_branch
      %46 = sbr.rel (0) target = $region17
    $region16: #{tpu_custom_call.1} parent=1 // pred_region
      %47 = dma.done [#allocation6], 256
    $region17: #{tpu_custom_call.1} parent=1 // pred_fallthru
      _
    %s48 = sadd.s32 0, 0
    %s49 = smul.u32 2, %s48
    %s50 = sadd.s32 0, 0
    %s51 = smul.u32 2, %s50
    %p52 = scmp.eq.s32.totalorder 0, 0
    // Predicated region
    $region18: #{tpu_custom_call.1} parent=1 // pred_check
      %p53 = pneg %p52
    $region19: #{tpu_custom_call.1} parent=1 // pred_check_branch
      %55 = sbr.rel (%p53) target = $region21
    $region20: #{tpu_custom_call.1} parent=1 // pred_region
      %56 = vst [vmem:[#allocation7] sm:$0xff] 0.0
    $region21: #{tpu_custom_call.1} parent=1 // pred_fallthru
      _
    %v57 = vld [vmem:[#allocation2] sm:$0xff]
    %v58 = vld [vmem:[#allocation2 + $0x8] sm:$0xff]
    %v59 = vld [vmem:[#allocation5] sm:$0xff]
    %v60 = vld [vmem:[#allocation5 + $0x8] sm:$0xff]
    %v61 = vsub.f32 %v57, %v59
    %v62 = vsub.f32 %v58, %v60
    %v63 = vmul.f32 %v61, -2.0
    %v64 = vmul.f32 %v62, -2.0
    %v65 = vmax.f32 %v63, 0.0
    %v66 = vmax.f32 %v64, 0.0
    %v67 = vand.u32 2147483647, %v63
    %v68 = vand.u32 2147483647, %v64
    %v69 = vsub.f32 0.0, %v67
    %v70 = vsub.f32 0.0, %v68
    %v71 = vmul.f32 %v69, 1.442695
    %v72 = vpow.pop %v71
    %v73 = vmul.f32 %v70, 1.442695
    %v74 = vpow.pop %v73
    %v75 = vadd.f32 %v72, 1.0
    %v76 = vlog2.pop %v75
    %v77 = vmul.f32 %v76, 0.6931472
    %v78 = vmul.f32 -0.5, %v72
    %v79 = vadd.f32 %v78, 1.0
    %v80 = vmul.f32 %v79, %v72
    %v81 = vand.u32 2147483647, %v72
    %vm82 = vcmp.lt.f32.partialorder %v81, 0.0004427343
    %v83 = vsel %vm82, %v80, %v77
    %v84 = vadd.f32 %v74, 1.0
    %v85 = vlog2.pop %v84
    %v86 = vmul.f32 %v85, 0.6931472
    %v87 = vmul.f32 -0.5, %v74
    %v88 = vadd.f32 %v87, 1.0
    %v89 = vmul.f32 %v88, %v74
    %v90 = vand.u32 2147483647, %v74
    %vm91 = vcmp.lt.f32.partialorder %v90, 0.0004427343
    %v92 = vsel %vm91, %v89, %v86
    %v93 = vadd.f32 %v65, %v83
    %v94 = vadd.f32 %v66, %v92
    %v95 = vadd.f32 %v61, %v93
    %v96 = vadd.f32 %v62, %v94
    %v97 = vsub.f32 %v95, 0.6931472
    %v98 = vsub.f32 %v96, 0.6931472
    %v99 = vadd.f32 %v97, %v98
    %v100 = vadd.f32 %v99, 0.0
    %v101 = vld [vmem:[#allocation7] sm:$0xff]
    %v102 = vadd.f32 %v101, %v100
    %103 = vst [vmem:[#allocation7] sm:$0xff] %v102
    // Predicated region
    $region22: #{tpu_custom_call.1} parent=1 // pred_check
      _
    $region23: #{tpu_custom_call.1} parent=1 // pred_check_branch
      %105 = sbr.rel (0) target = $region25
    $region24: #{tpu_custom_call.1} parent=1 // pred_region
      %s107 = ssub.s32 128, 128
      %108 = vsyncadd [#allocation4], %s107
      %s110 = sshll.u32 [#allocation7], 4
      %s111 = int_to_ptr.vmem [resolvable:$true] %s110
      %113 = dma.vmem_to_hbm [thread:$0]  %s111, 128, %s2, [#allocation4]
    $region25: #{tpu_custom_call.1} parent=1 // pred_fallthru
      _
    // Predicated region
    $region26: #{tpu_custom_call.1} parent=1 // pred_check
      _
    $region27: #{tpu_custom_call.1} parent=1 // pred_check_branch
      %115 = sbr.rel (0) target = $region29
    $region28: #{tpu_custom_call.1} parent=1 // pred_region
      %116 = dma.done [#allocation4], 128
    $region29: #{tpu_custom_call.1} parent=1 // pred_fallthru
      _
    %117 = vsyncpa [#allocation3], 1
    %118 = vsyncpa [#allocation6], 1
    %119 = vsyncpa [#allocation4], 1

</llo_original>
